<compile_context>
chip_gen: v6e
topology: v6e:2x2x1
jax: 0.10.0
libtpu: 0.0.40
codegen_flags: <defaults>
</compile_context>

<pallas_src>
import numpy as np
import jax
import jax.numpy as jnp
from jax.experimental import pallas as pl
from jax.experimental.pallas import tpu as pltpu


_LANE = 128
_SUBLANE = 8
_NEG = -1e30  # finite "minus infinity" lane pad (s * _NEG stays finite in f32)


def _round_up(a, b):
    return ((a + b - 1) // b) * b


def _choose_tile_rows(b, c_pad, itemsize):
    # Keep the double-buffered x footprint <= ~24 MiB so the tile is safe on v7x
    # (64 MiB physical VMEM per TC) while still large enough to hide DMA latency.
    budget = 24 * 1024 * 1024
    max_tb = max(_SUBLANE, budget // (2 * c_pad * itemsize))
    tb = min(_round_up(b, _SUBLANE), 512, max_tb)
    return max(_SUBLANE, (tb // _SUBLANE) * _SUBLANE)


def _make_ldam_kernel(s, inv_b, b_real, tb, n_tiles):
    s = float(s)
    inv_b = float(inv_b)

    def kernel(x_ref, tgt_ref, m_ref, o_ref, acc_ref):
        c = pl.program_id(0)   # core-split axis ("parallel")
        i = pl.program_id(1)   # batch-tile axis ("arbitrary", accumulated)

        @pl.when(i == 0)
        def _():
            acc_ref[...] = jnp.zeros_like(acc_ref)

        x = x_ref[...].astype(jnp.float32)        # (TB, Cpad)
        tgt = tgt_ref[...]                        # (TB, 1) int32
        m_list = m_ref[...]                       # (1, Cpad) f32
        tb_k, c_pad = x.shape

        # one-hot(target) built in-kernel (replaces index.scatter_)
        cls_idx = jax.lax.broadcasted_iota(jnp.int32, (tb_k, c_pad), 1)
        onehot = (cls_idx == tgt).astype(jnp.float32)

        # Per-row margin and target logit (one reduction each; the target logit
        # is never recomputed from the scaled logits).
        batch_m = jnp.sum(onehot * m_list, axis=-1, keepdims=True)   # (TB, 1)
        x_t = jnp.sum(onehot * x, axis=-1, keepdims=True)            # (TB, 1)

        # z = where(onehot, x - batch_m, x); single live (TB, Cpad) temporary.
        z = x - batch_m * onehot
        mx = jnp.max(z, axis=-1, keepdims=True)
        lse = s * mx + jnp.log(
            jnp.sum(jnp.exp(s * (z - mx)), axis=-1, keepdims=True))
        per_sample = lse - s * (x_t - batch_m)                        # (TB, 1)

        # Mask rows that are batch padding (partial last tile).
        row = jax.lax.broadcasted_iota(jnp.int32, (tb_k, 1), 0)
        global_row = (c * n_tiles + i) * tb + row
        valid = (global_row < b_real).astype(jnp.float32)
        acc_ref[...] += per_sample * valid

        @pl.when(i == n_tiles - 1)
        def _():
            total = jnp.sum(acc_ref[...]) * inv_b
            r = jax.lax.broadcasted_iota(jnp.int32, o_ref.shape, 0)
            l = jax.lax.broadcasted_iota(jnp.int32, o_ref.shape, 1)
            o_ref[...] = jnp.where((r == 0) & (l == 0), total, 0.0)

    return kernel


class LDAMLossPallas:
    """JAX/Pallas port of LDAMLoss (weight=None)."""

    def __init__(self, cls_num_list, max_m=0.5, weight=None, s=30.0):
        m_list = 1.0 / np.sqrt(np.sqrt(np.asarray(cls_num_list, dtype=np.float64)))
        m_list = m_list * (max_m / np.max(m_list))
        self.m_list = jnp.asarray(m_list, dtype=jnp.float32)   # (C,)
        assert s > 0
        self.s = float(s)
        # TODO(synk): per-class `weight` for cross_entropy not implemented (weight=None path only).
        assert weight is None

    def __call__(self, x, target):
        B, C = x.shape
        if x.dtype not in (jnp.float32, jnp.bfloat16):
            x = x.astype(jnp.float32)
        itemsize = jnp.dtype(x.dtype).itemsize

        # Lane-dense class axis, batch tiled for pipelining, optional 2-way
        # split of the batch tiles across TensorCores (v7x megacore).
        c_pad = max(_LANE, _round_up(C, _LANE))
        tb = _choose_tile_rows(B, c_pad, itemsize)
        n_row_blocks = -(-B // tb)
        nsplit = 2 if n_row_blocks >= 2 else 1
        n_tiles = -(-n_row_blocks // nsplit)
        b_tot = nsplit * n_tiles * tb

        xp = x
        if c_pad > C:
            xp = jnp.pad(xp, ((0, 0), (0, c_pad - C)), constant_values=_NEG)
        if b_tot > B:
            xp = jnp.pad(xp, ((0, b_tot - B), (0, 0)))
        tp = target.astype(jnp.int32).reshape(B, 1)
        if b_tot > B:
            tp = jnp.pad(tp, ((0, b_tot - B), (0, 0)))
        mp = self.m_list
        if c_pad > C:
            mp = jnp.pad(mp, (0, c_pad - C))
        mp = mp.reshape(1, c_pad)

        kernel = _make_ldam_kernel(self.s, 1.0 / B, B, tb, n_tiles)

        x_tile_bytes = tb * c_pad * itemsize
        vmem_limit = int(min(48 << 20, max(8 << 20, 3 * x_tile_bytes + (2 << 20))))
        cost = pl.CostEstimate(
            flops=int(8 * b_tot * c_pad),
            transcendentals=int(b_tot * c_pad + b_tot),
            bytes_accessed=int(b_tot * c_pad * itemsize + 4 * b_tot + 4 * c_pad),
        )

        out = pl.pallas_call(
            kernel,
            out_shape=jax.ShapeDtypeStruct((nsplit * _SUBLANE, _LANE), jnp.float32),
            grid_spec=pltpu.PrefetchScalarGridSpec(
                num_scalar_prefetch=0,
                grid=(nsplit, n_tiles),
                in_specs=[
                    pl.BlockSpec((tb, c_pad), lambda c, i: (c * n_tiles + i, 0)),
                    pl.BlockSpec((tb, 1), lambda c, i: (c * n_tiles + i, 0)),
                    pl.BlockSpec((1, c_pad), lambda c, i: (0, 0)),
                ],
                out_specs=pl.BlockSpec((_SUBLANE, _LANE), lambda c, i: (c, 0)),
                scratch_shapes=[pltpu.VMEM((tb, 1), jnp.float32)],
            ),
            compiler_params=pltpu.CompilerParams(
                dimension_semantics=("parallel", "arbitrary"),
                vmem_limit_bytes=vmem_limit,
            ),
            cost_estimate=cost,
        )(xp, tp, mp)

        # Each core-split block contributes its partial (already scaled by 1/B)
        # at [0, 0] of its (8, 128) output slab; everything else is zero.
        return jnp.sum(out)


def _reference_ldam(x, target, m_list, s):
    C = x.shape[-1]
    onehot = jax.nn.one_hot(target, C, dtype=jnp.float32)
    batch_m = (onehot * m_list[None, :]).sum(-1, keepdims=True)
    logits = s * (x.astype(jnp.float32) - batch_m * onehot)
    logp = jax.nn.log_softmax(logits, axis=-1)
    return -jnp.mean(jnp.sum(onehot * logp, axis=-1))


if __name__ == "__main__":
    key = jax.random.PRNGKey(0)

    def check(B, C, k):
        kx, kt = jax.random.split(k)
        x = jax.random.normal(kx, (B, C), dtype=jnp.float32)
        target = jax.random.randint(kt, (B,), 0, C, dtype=jnp.int32)
        cls_num_list = [100 - (5 * i) % 90 for i in range(C)]  # deterministic, imbalanced
        loss_fn = LDAMLossPallas(cls_num_list, max_m=0.5, weight=None, s=30.0)
        loss = loss_fn(x, target)
        jax.block_until_ready(loss)
        ref = _reference_ldam(x, target, loss_fn.m_list, loss_fn.s)
        assert jnp.allclose(loss, ref, rtol=1e-4, atol=1e-4), (B, C, loss, ref)
        return loss

    k1, k2 = jax.random.split(key)
    check(8, 16, k1)        # single tile, lane padding (C=16 -> 128)
    check(1040, 150, k2)    # multi-tile pipeline, 2-way core split, row masking

    print("KERNEL_OK")
</pallas_src>

<mosaic_0001>
module attributes {stable_mosaic.version = 11 : i64} {
  func.func @kernel(%arg0: i32, %arg1: i32, %arg2: memref<8x128xf32, #tpu.memory_space<vmem>>, %arg3: memref<8x1xi32, #tpu.memory_space<vmem>>, %arg4: memref<1x128xf32, #tpu.memory_space<vmem>>, %arg5: memref<8x128xf32, #tpu.memory_space<vmem>>, %arg6: memref<8x1xf32, #tpu.memory_space<vmem>>) attributes {dimension_semantics = [#tpu.dimension_semantics<parallel>, #tpu.dimension_semantics<arbitrary>], iteration_bounds = array<i64: 1, 1>, scalar_prefetch = 0 : i64, scratch_operands = 1 : i64, tpu.core_type = #tpu.core_type<tc>, window_params = [{transform_indices = @transform_0, window_bounds = array<i64: 8, 128>}, {transform_indices = @transform_1, window_bounds = array<i64: 8, 1>}, {pipeline_mode = #tpu.pipeline_mode<synchronous>, transform_indices = @transform_2, window_bounds = array<i64: 1, 128>}, {transform_indices = @transform_3, window_bounds = array<i64: 8, 128>}]} {
    %c0_i32 = arith.constant 0 : i32
    %0 = arith.cmpi eq, %arg1, %c0_i32 : i32
    %1 = arith.extui %0 : i1 to i32
    %c0_i32_0 = arith.constant 0 : i32
    %2 = arith.cmpi ne, %1, %c0_i32_0 : i32
    scf.if %2 {
      %cst_19 = arith.constant 0.000000e+00 : f32
      %55 = vector.broadcast %cst_19 : f32 to vector<8x1xf32>
      %c0_20 = arith.constant 0 : index
      %c0_21 = arith.constant 0 : index
      %56 = vector.load %arg6[%c0_20, %c0_21] : memref<8x1xf32, #tpu.memory_space<vmem>>, vector<8x1xf32>
      tpu.vector_store %arg6[%c0_20, %c0_21], %55 {strides = array<i32>} : memref<8x1xf32, #tpu.memory_space<vmem>>, vector<8x1xf32>,
    } else {
    }
    %c0 = arith.constant 0 : index
    %c0_1 = arith.constant 0 : index
    %3 = vector.load %arg2[%c0, %c0_1] : memref<8x128xf32, #tpu.memory_space<vmem>>, vector<8x128xf32>
    %c0_2 = arith.constant 0 : index
    %c0_3 = arith.constant 0 : index
    %4 = vector.load %arg3[%c0_2, %c0_3] : memref<8x1xi32, #tpu.memory_space<vmem>>, vector<8x1xi32>
    %c0_4 = arith.constant 0 : index
    %c0_5 = arith.constant 0 : index
    %5 = vector.load %arg4[%c0_4, %c0_5] : memref<1x128xf32, #tpu.memory_space<vmem>>, vector<1x128xf32>
    %6 = tpu.iota {dimensions = array<i32: 1>} : vector<8x128xi32>
    %7 = vector.broadcast %4 : vector<8x1xi32> to vector<8x128xi32>
    %8 = arith.cmpi eq, %6, %7 : vector<8x128xi32>
    %9 = arith.extui %8 : vector<8x128xi1> to vector<8x128xi32>
    %10 = arith.sitofp %9 : vector<8x128xi32> to vector<8x128xf32>
    %11 = vector.broadcast %5 : vector<1x128xf32> to vector<8x128xf32>
    %12 = arith.mulf %10, %11 : vector<8x128xf32>
    %cst = arith.constant dense<0.000000e+00> : vector<8xf32>
    %13 = vector.multi_reduction <add>, %12, %cst [1] : vector<8x128xf32> to vector<8xf32>
    %14 = vector.shape_cast %13 : vector<8xf32> to vector<8x1xf32>
    %15 = arith.mulf %10, %3 : vector<8x128xf32>
    %cst_6 = arith.constant dense<0.000000e+00> : vector<8xf32>
    %16 = vector.multi_reduction <add>, %15, %cst_6 [1] : vector<8x128xf32> to vector<8xf32>
    %17 = vector.shape_cast %16 : vector<8xf32> to vector<8x1xf32>
    %18 = vector.broadcast %14 : vector<8x1xf32> to vector<8x128xf32>
    %19 = arith.mulf %18, %10 : vector<8x128xf32>
    %20 = arith.subf %3, %19 : vector<8x128xf32>
    %cst_7 = arith.constant dense<0xFF800000> : vector<8xf32>
    %21 = vector.multi_reduction <maximumf>, %20, %cst_7 [1] : vector<8x128xf32> to vector<8xf32>
    %22 = vector.shape_cast %21 : vector<8xf32> to vector<8x1xf32>
    %cst_8 = arith.constant 3.000000e+01 : f32
    %23 = vector.broadcast %cst_8 : f32 to vector<8x1xf32>
    %24 = arith.mulf %23, %22 : vector<8x1xf32>
    %25 = vector.broadcast %22 : vector<8x1xf32> to vector<8x128xf32>
    %26 = arith.subf %20, %25 : vector<8x128xf32>
    %cst_9 = arith.constant 3.000000e+01 : f32
    %27 = vector.broadcast %cst_9 : f32 to vector<8x128xf32>
    %28 = arith.mulf %27, %26 : vector<8x128xf32>
    %29 = math.exp %28 : vector<8x128xf32>
    %cst_10 = arith.constant dense<0.000000e+00> : vector<8xf32>
    %30 = vector.multi_reduction <add>, %29, %cst_10 [1] : vector<8x128xf32> to vector<8xf32>
    %31 = vector.shape_cast %30 : vector<8xf32> to vector<8x1xf32>
    %32 = math.log %31 : vector<8x1xf32>
    %33 = arith.addf %24, %32 : vector<8x1xf32>
    %34 = arith.subf %17, %14 : vector<8x1xf32>
    %cst_11 = arith.constant 3.000000e+01 : f32
    %35 = vector.broadcast %cst_11 : f32 to vector<8x1xf32>
    %36 = arith.mulf %35, %34 : vector<8x1xf32>
    %37 = arith.subf %33, %36 : vector<8x1xf32>
    %38 = tpu.iota {dimensions = array<i32: 0>} : vector<8x1xi32>
    %c1_i32 = arith.constant 1 : i32
    %39 = arith.muli %arg0, %c1_i32 : i32
    %40 = arith.addi %39, %arg1 : i32
    %c8_i32 = arith.constant 8 : i32
    %41 = arith.muli %40, %c8_i32 : i32
    %42 = vector.broadcast %41 : i32 to vector<8x1xi32>
    %43 = arith.addi %42, %38 : vector<8x1xi32>
    %c8_i32_12 = arith.constant 8 : i32
    %44 = vector.broadcast %c8_i32_12 : i32 to vector<8x1xi32>
    %45 = arith.cmpi slt, %43, %44 : vector<8x1xi32>
    %46 = arith.extui %45 : vector<8x1xi1> to vector<8x1xi32>
    %47 = arith.sitofp %46 : vector<8x1xi32> to vector<8x1xf32>
    %c0_13 = arith.constant 0 : index
    %c0_14 = arith.constant 0 : index
    %48 = vector.load %arg6[%c0_13, %c0_14] : memref<8x1xf32, #tpu.memory_space<vmem>>, vector<8x1xf32>
    %49 = arith.mulf %37, %47 : vector<8x1xf32>
    %50 = arith.addf %48, %49 : vector<8x1xf32>
    %c0_15 = arith.constant 0 : index
    %c0_16 = arith.constant 0 : index
    %51 = vector.load %arg6[%c0_15, %c0_16] : memref<8x1xf32, #tpu.memory_space<vmem>>, vector<8x1xf32>
    tpu.vector_store %arg6[%c0_15, %c0_16], %50 {strides = array<i32>} : memref<8x1xf32, #tpu.memory_space<vmem>>, vector<8x1xf32>,
    %c0_i32_17 = arith.constant 0 : i32
    %52 = arith.cmpi eq, %arg1, %c0_i32_17 : i32
    %53 = arith.extui %52 : i1 to i32
    %c0_i32_18 = arith.constant 0 : i32
    %54 = arith.cmpi ne, %53, %c0_i32_18 : i32
    scf.if %54 {
      %c0_19 = arith.constant 0 : index
      %c0_20 = arith.constant 0 : index
      %55 = vector.load %arg6[%c0_19, %c0_20] : memref<8x1xf32, #tpu.memory_space<vmem>>, vector<8x1xf32>
      %56 = vector.shape_cast %55 : vector<8x1xf32> to vector<1x8x1xf32>
      %cst_21 = arith.constant dense<0.000000e+00> : vector<1xf32>
      %57 = vector.multi_reduction <add>, %56, %cst_21 [1, 2] : vector<1x8x1xf32> to vector<1xf32>
      %58 = vector.shape_cast %57 : vector<1xf32> to vector<1x1x1xf32>
      %59 = vector.extract %58[0, 0, 0] : f32 from vector<1x1x1xf32>
      %cst_22 = arith.constant 1.250000e-01 : f32
      %60 = arith.mulf %59, %cst_22 : f32
      %61 = tpu.iota {dimensions = array<i32: 0>} : vector<8x128xi32>
      %62 = tpu.iota {dimensions = array<i32: 1>} : vector<8x128xi32>
      %c0_i32_23 = arith.constant 0 : i32
      %63 = vector.broadcast %c0_i32_23 : i32 to vector<8x128xi32>
      %64 = arith.cmpi eq, %61, %63 : vector<8x128xi32>
      %c0_i32_24 = arith.constant 0 : i32
      %65 = vector.broadcast %c0_i32_24 : i32 to vector<8x128xi32>
      %66 = arith.cmpi eq, %62, %65 : vector<8x128xi32>
      %67 = arith.andi %64, %66 : vector<8x128xi1>
      %cst_25 = arith.constant 0.000000e+00 : f32
      %68 = vector.broadcast %60 : f32 to vector<8x128xf32>
      %69 = vector.broadcast %cst_25 : f32 to vector<8x128xf32>
      %70 = arith.select %67, %68, %69 : vector<8x128xi1>, vector<8x128xf32>
      %c0_26 = arith.constant 0 : index
      %c0_27 = arith.constant 0 : index
      %71 = vector.load %arg5[%c0_26, %c0_27] : memref<8x128xf32, #tpu.memory_space<vmem>>, vector<8x128xf32>
      tpu.vector_store %arg5[%c0_26, %c0_27], %70 {strides = array<i32>} : memref<8x128xf32, #tpu.memory_space<vmem>>, vector<8x128xf32>,
    } else {
    }
    return
  }
  func.func @transform_0(%arg0: i32, %arg1: i32) -> (i32, i32) {
    %c1_i32 = arith.constant 1 : i32
    %0 = arith.muli %arg0, %c1_i32 : i32
    %1 = arith.addi %0, %arg1 : i32
    %c0_i32 = arith.constant 0 : i32
    %c0_i32_0 = arith.constant 0 : i32
    return %1, %c0_i32 : i32, i32
  }
  func.func @transform_1(%arg0: i32, %arg1: i32) -> (i32, i32) {
    %c1_i32 = arith.constant 1 : i32
    %0 = arith.muli %arg0, %c1_i32 : i32
    %1 = arith.addi %0, %arg1 : i32
    %c0_i32 = arith.constant 0 : i32
    %c0_i32_0 = arith.constant 0 : i32
    return %1, %c0_i32 : i32, i32
  }
  func.func @transform_2(%arg0: i32, %arg1: i32) -> (i32, i32) {
    %c0_i32 = arith.constant 0 : i32
    %c0_i32_0 = arith.constant 0 : i32
    %c0_i32_1 = arith.constant 0 : i32
    return %c0_i32, %c0_i32_0 : i32, i32
  }
  func.func @transform_3(%arg0: i32, %arg1: i32) -> (i32, i32) {
    %c0_i32 = arith.constant 0 : i32
    %c0_i32_0 = arith.constant 0 : i32
    return %arg0, %c0_i32 : i32, i32
  }
}

</mosaic_0001>

<llo_original>
// kernel: tpu_custom_call.1
$region0: #{tpu_custom_call.1}
  #allocation0 [shape = 'u32[]', space=smem, size = 0x4, offset = 0x4, fixed_abs, tag = 'smem constant byte address 0x4 - core index']
  #allocation1 [shape = 'u32[144,128]{1,0:T(1,128)}', space=vmem, size = 0x12000, scoped, tag = 'internal scratch']
  #allocation2 [shape = 'f32[8,1]{1,0:T(8,128)}', space=vmem, size = 0x1000, scoped, tag = 'scratch operand']
  %s0 = inlined_call_operand.vmem [shape: f32[8,128], index: 0, kind: input, shape index: {}]
  %s1 = inlined_call_operand.vmem [shape: s32[8,1], index: 1, kind: input, shape index: {}]
  %s2 = inlined_call_operand.vmem [shape: f32[1,128], index: 2, kind: input, shape index: {}]
  %s3 = inlined_call_operand.hbm [shape: f32[8,128], index: 3, kind: output, shape index: {}]
  %s4 = sld [smem:[#allocation0]]
  $region30: #{tpu_custom_call.1} parent=0
    _
  %s6 = ssub.s32 1, %s4
  %s7 = scalar_select 0, %s6, %s4
  $region1: #{tpu_custom_call.1} parent=0
    #allocation3 [shape = 'u8[4096]{0}', space=vmem, size = 0x1000, scoped, tag = 'output window, operand 0, single buffered']
    #allocation4 [shape = 's32[1]{0}', space=sflag, size = 0x4, scoped, tag = 'scoped memory for tpu_custom_call.1']
    %8 = vsyncpa [#allocation4], 0
    // Predicated region
    $region2: #{tpu_custom_call.1} parent=1 // pred_check
      _
    $region3: #{tpu_custom_call.1} parent=1 // pred_check_branch
      %10 = sbr.rel (0) target = $region5
    $region4: #{tpu_custom_call.1} parent=1 // pred_region
      %s11 = sadd.s32 0, 0
      %p12 = scmp.lt.s32.totalorder %s11, 0
      %s13 = scalar_select %p12, %s11, 0
      %s14 = smul.addr %s13, 8
      %s15 = scalar_lea.vmem %s0, %s14
      %s16 = sadd.s32 0, 0
    $region5: #{tpu_custom_call.1} parent=1 // pred_fallthru
      _
    // Predicated region
    $region6: #{tpu_custom_call.1} parent=1 // pred_check
      _
    $region7: #{tpu_custom_call.1} parent=1 // pred_check_branch
      %18 = sbr.rel (0) target = $region9
    $region8: #{tpu_custom_call.1} parent=1 // pred_region
      %s19 = sadd.s32 0, 0
      %p20 = scmp.lt.s32.totalorder %s19, 0
      %s21 = scalar_select %p20, %s19, 0
      %s22 = smul.addr %s21, 8
      %s23 = scalar_lea.vmem %s1, %s22
      %s24 = sadd.s32 0, 0
    $region9: #{tpu_custom_call.1} parent=1 // pred_fallthru
      _
    // Predicated region
    $region10: #{tpu_custom_call.1} parent=1 // pred_check
      _
    $region11: #{tpu_custom_call.1} parent=1 // pred_check_branch
      %26 = sbr.rel (0) target = $region13
    $region12: #{tpu_custom_call.1} parent=1 // pred_region
      _
    $region13: #{tpu_custom_call.1} parent=1 // pred_fallthru
      _
    %s27 = sadd.s32 0, 0
    %p28 = scmp.lt.s32.totalorder %s27, 0
    %s29 = scalar_select %p28, %s27, 0
    %s30 = smul.addr %s29, 8
    %s31 = scalar_lea.vmem %s0, %s30
    %s32 = sadd.s32 0, 0
    %p33 = scmp.lt.s32.totalorder %s32, 0
    %s34 = scalar_select %p33, %s32, 0
    %s35 = smul.addr %s34, 8
    %s36 = scalar_lea.vmem %s1, %s35
    %s37 = sadd.s32 0, 0
    %p38 = scmp.lt.s32.totalorder %s37, 0
    %s39 = scalar_select %p38, %s37, 0
    %s40 = smul.addr %s39, 8
    %s41 = scalar_lea.vmem %s0, %s40
    %s42 = sadd.s32 0, 0
    %s43 = sadd.s32 0, 0
    %p44 = scmp.lt.s32.totalorder %s43, 0
    %s45 = scalar_select %p44, %s43, 0
    %s46 = smul.addr %s45, 8
    %s47 = scalar_lea.vmem %s1, %s46
    %s48 = sadd.s32 0, 0
    %p49 = scmp.eq.s32.totalorder 0, 0
    // Predicated region
    $region14: #{tpu_custom_call.1} parent=1 // pred_check
      %p50 = pneg %p49
    $region15: #{tpu_custom_call.1} parent=1 // pred_check_branch
      %52 = sbr.rel (%p50) target = $region17
    $region16: #{tpu_custom_call.1} parent=1 // pred_region
      %vm53 = vcmask 7168
      %54 = vst.msk [vmem:[#allocation2] sm:$0xff] %vm53, 0.0
    $region17: #{tpu_custom_call.1} parent=1 // pred_fallthru
      _
    %v55 = vld [vmem:[%s41] sm:$0xff]
    %v56 = vld [vmem:[%s47] sm:$0xff]
    %v57 = vld [vmem:[%s2] sm:$0x1]
    %v58 = vlaneseq
    %v59 = vand.u32 %v58, 127
    %60 = vset.pattern.permute.xlu0 0
    %61 = vperm.xlu0 %60, %v56
    %v62 = vpop.permute.xlu0 %61
    %vm63 = vcmp.eq.s32.totalorder %v59, %v62
    %v64 = vsel %vm63, 1, 0
    %v65 = vcvt.s32.f32 %v64
    %v67 = vlaneseq
    %v68 = vshrl.u32 %v67, 7
    %v69 = vsub.s32 0, %v68
    %v70 = vrot.slane %v57, %v69
    %v72 = vmul.f32 %v65, %v70
    %73 = vadd.xlane.f32.xlu0 %v72
    %v74 = vpop.xlane.xlu0 %73
    %v75 = vmul.f32 %v65, %v55
    %76 = vadd.xlane.f32.xlu0 %v75
    %v77 = vpop.xlane.xlu0 %76
    %v78 = vmul.f32 %v74, %v65
    %v79 = vsub.f32 %v55, %v78
    %80 = vmax.xlane.f32.xlu0 %v79
    %v81 = vpop.xlane.xlu0 %80
    %v82 = vmul.f32 %v81, 30.0
    %v83 = vsub.f32 %v79, %v81
    %v84 = vmul.f32 %v83, 30.0
    %v85 = vmul.f32 %v84, 1.442695
    %v86 = vpow.pop %v85
    %87 = vadd.xlane.f32.xlu0 %v86
    %v88 = vpop.xlane.xlu0 %87
    %v89 = vlog2.pop %v88
    %v90 = vmul.f32 %v89, 0.6931472
    %v91 = vadd.f32 %v82, %v90
    %v92 = vsub.f32 %v77, %v74
    %v93 = vmul.f32 %v92, 30.0
    %v94 = vsub.f32 %v91, %v93
    %v95 = vlaneseq
    %v96 = vshrl.u32 %v95, 7
    %s97 = sadd.s32 0, 0
    %s98 = smul.u32 %s97, 8
    %v99 = vstv %s98
    %v100 = vadd.s32 %v99, %v96
    %vm101 = vcmp.lt.s32.totalorder %v100, 8
    %v102 = vsel %vm101, 1, 0
    %v103 = vcvt.s32.f32 %v102
    %v104 = vld [vmem:[#allocation2] sm:$0xff]
    %v105 = vmul.f32 %v94, %v103
    %v106 = vadd.f32 %v104, %v105
    %vm107 = vcmask 7168
    %108 = vst.msk [vmem:[#allocation2] sm:$0xff] %vm107, %v106
    // Predicated region
    $region18: #{tpu_custom_call.1} parent=1 // pred_check
      %p109 = pneg %p49
    $region19: #{tpu_custom_call.1} parent=1 // pred_check_branch
      %111 = sbr.rel (%p109) target = $region21
    $region20: #{tpu_custom_call.1} parent=1 // pred_region
      %v112 = vld [vmem:[#allocation2] sm:$0xff]
      %v113 = vsel %vm107, %v112, 0.0
      %114 = vadd.xlane.f32.xlu0 %v113
      %v115 = vpop.xlane.xlu0 %114
      %v116 = vrot.slane %v115, 4
      %v117 = vadd.f32 %v115, %v116
      %v118 = vrot.slane %v117, 2
      %v119 = vadd.f32 %v117, %v118
      %v120 = vrot.slane %v119, 1
      %v121 = vadd.f32 %v119, %v120
      %s122 = vtos %v121
      %s123 = smul.f32 %s122, 0.125
      %vm124 = vcmp.eq.s32.totalorder %v96, 0
      %vm125 = vcmp.eq.s32.totalorder %v59, 0
      %vm126 = vmand %vm124, %vm125
      %v127 = vstv %s123
      %v128 = vsel %vm126, %v127, 0.0
      %129 = vst [vmem:[#allocation3] sm:$0xff] %v128
    $region21: #{tpu_custom_call.1} parent=1 // pred_fallthru
      _
    // Predicated region
    $region22: #{tpu_custom_call.1} parent=1 // pred_check
      _
    $region23: #{tpu_custom_call.1} parent=1 // pred_check_branch
      %131 = sbr.rel (0) target = $region25
    $region24: #{tpu_custom_call.1} parent=1 // pred_region
      %s133 = ssub.s32 128, 128
      %134 = vsyncadd [#allocation4], %s133
      %s136 = sshll.u32 [#allocation3], 4
      %s137 = int_to_ptr.vmem [resolvable:$true] %s136
      %139 = dma.vmem_to_hbm [thread:$0]  %s137, 128, %s3, [#allocation4]
    $region25: #{tpu_custom_call.1} parent=1 // pred_fallthru
      _
    // Predicated region
    $region26: #{tpu_custom_call.1} parent=1 // pred_check
      _
    $region27: #{tpu_custom_call.1} parent=1 // pred_check_branch
      %141 = sbr.rel (0) target = $region29
    $region28: #{tpu_custom_call.1} parent=1 // pred_region
      %142 = dma.done [#allocation4], 128
    $region29: #{tpu_custom_call.1} parent=1 // pred_fallthru
      _
    %143 = vsyncpa [#allocation4], 1

</llo_original>
